<compile_context>
chip_gen: v6e
topology: v6e:2x2x1
jax: 0.10.0
libtpu: 0.0.40
codegen_flags: <defaults>
</compile_context>

<pallas_src>
import jax
import jax.numpy as jnp
from jax.experimental import pallas as pl
from jax.experimental.pallas import tpu as pltpu

EPS_LN = 1e-5
_NEG_INF = -1e30


def _round_up(x, m):
    return (x + m - 1) // m * m


def _tpu_vmem_capacity():
    cap = 128 * 1024 * 1024
    try:
        info = pltpu.get_tpu_info()
        cap = int(getattr(info, "vmem_capacity_bytes", cap))
    except Exception:
        pass
    return cap


def _vmem_limit_bytes(cap):
    # Generation-aware scoped-VMEM limit: ~16 MiB compiler headroom, capped at
    # ~100 MiB on 128 MiB parts (v5e/v6e); ~48 MiB on v7x (64 MiB physical).
    return int(min(max(cap - (16 << 20), 32 << 20), 100 << 20))


def _geometry(n, vmem_cap):
    """Return (n_pad, tm, tk): padded node count + (dst, src) node tiles."""
    if n <= 1024:
        n_pad = _round_up(n, 8)
        tm = n_pad
        # give the "parallel" dst axis >= 2 tiles (v7x megacore) when possible
        for cand in (256, 128, 64):
            if n_pad % cand == 0 and n_pad // cand >= 2:
                tm = cand
                break
        return n_pad, tm, n_pad
    n_pad = _round_up(n, 512)
    tm = 1024 if (n_pad % 1024 == 0 and n_pad >= 2048) else 512
    tk_cap = 4096 if vmem_cap >= (96 << 20) else 2048  # wider src tiles on 128 MiB parts
    tk = 512
    while tk * 2 <= tk_cap and n_pad % (tk * 2) == 0:
        tk *= 2
    return n_pad, tm, tk


def _full_spec(arr):
    nd = arr.ndim
    return pl.BlockSpec(arr.shape, lambda *args: (0,) * nd)


def _masked_layernorm(x, g, b, d_real):
    """LayerNorm over the first d_real lanes of a zero-padded last dim (f32 stats)."""
    d_pad = x.shape[-1]
    inv_d = 1.0 / float(d_real)
    if d_real == d_pad:
        mu = jnp.mean(x, axis=-1, keepdims=True)
        xc = x - mu
    else:
        col = jax.lax.broadcasted_iota(jnp.int32, x.shape, x.ndim - 1)
        mask = (col < d_real).astype(jnp.float32)
        mu = jnp.sum(x * mask, axis=-1, keepdims=True) * inv_d
        xc = (x - mu) * mask
    var = jnp.sum(xc * xc, axis=-1, keepdims=True) * inv_d
    # gamma is zero in padded lanes, so padded outputs stay exactly 0.
    return xc * jax.lax.rsqrt(var + EPS_LN) * g + b


# ---------------------------------------------------------------------------
# Kernel 1: one hetero-SAGE layer over R relations (optionally fused with the
# GNN output MLP on the last layer).
#   out = relu( sum_r diag(1/deg_r) @ (A_count[r] @ (x @ Wn[r]))
#               + x @ (sum_r Ws[r]) + sum_r b[r] )
#   [fused]: Linear -> ReLU -> LayerNorm -> Dropout(eval) -> Linear
# Grid: (dst tiles [parallel], relation [arbitrary], src tiles [arbitrary]).
# ---------------------------------------------------------------------------
def _make_sage_kernel(hidden_real, fuse_mlp):
    def kernel(y_ref, a_ref, idg_ref, root_ref, *rest):
        if fuse_mlp:
            (w1_ref, b1_ref, g_ref, be_ref, w2_ref, b2_ref, o_ref, agg_ref) = rest
        else:
            (o_ref, agg_ref) = rest

        r = pl.program_id(1)
        k = pl.program_id(2)

        @pl.when(jnp.logical_and(r == 0, k == 0))
        def _():
            # seed the accumulator with the hoisted root/self contribution
            agg_ref[...] = root_ref[...]

        # int8 0/1 counts -> bf16 (VPU convert hides under the A DMA); one wide
        # MXU matmul per step; exact f32 inverse-degree applied per dst row.
        part = jnp.dot(a_ref[0].astype(jnp.bfloat16), y_ref[0],
                       preferred_element_type=jnp.float32)
        agg_ref[...] += idg_ref[0] * part

        @pl.when(jnp.logical_and(r == pl.num_programs(1) - 1,
                                 k == pl.num_programs(2) - 1))
        def _():
            acc = jnp.maximum(agg_ref[...], 0.0)
            if fuse_mlp:
                h = jnp.dot(acc.astype(jnp.bfloat16), w1_ref[...],
                            preferred_element_type=jnp.float32) + b1_ref[...]
                h = jnp.maximum(h, 0.0)
                h = _masked_layernorm(h, g_ref[...], be_ref[...], hidden_real)
                acc = jnp.dot(h.astype(jnp.bfloat16), w2_ref[...],
                              preferred_element_type=jnp.float32) + b2_ref[...]
            o_ref[...] = acc.astype(o_ref.dtype)

    return kernel


def hetero_sage_layer(h_bf16, a_count, inv_deg, layer_p, geom, vmem_limit,
                      mlp=None, hidden_real=1):
    n_pad, tm, tk = geom
    num_rel = a_count.shape[0]
    dpad = layer_p["wn"].shape[-1]

    # Associativity hoist (XLA, tiny next to the O(R*N^2) A stream):
    #   Y[r] = X @ Wn[r]  and  root = X @ (sum_r Ws[r]) + sum_r b[r]
    y = jnp.einsum("nd,rdo->rno", h_bf16, layer_p["wn"])                     # bf16 (R,N,D)
    root = jnp.dot(h_bf16, layer_p["ws_sum"],
                   preferred_element_type=jnp.float32) + layer_p["b_sum"]    # f32  (N,D)

    fuse = mlp is not None
    out_pad = mlp["w2"].shape[-1] if fuse else dpad

    in_specs = [
        pl.BlockSpec((1, tk, dpad), lambda i, r, k: (r, k, 0)),   # Y[r] (src rows, bf16)
        pl.BlockSpec((1, tm, tk), lambda i, r, k: (r, i, k)),     # A counts (int8)
        pl.BlockSpec((1, tm, 1), lambda i, r, k: (r, i, 0)),      # 1/deg (f32)
        pl.BlockSpec((tm, dpad), lambda i, r, k: (i, 0)),         # root/self path (f32)
    ]
    args = [y, a_count, inv_deg, root]
    if fuse:
        mlp_args = [mlp["w1"], mlp["b1"], mlp["g"], mlp["be"], mlp["w2"], mlp["b2"]]
        in_specs += [_full_spec(a) for a in mlp_args]
        args += mlp_args

    flops = 2 * num_rel * n_pad * n_pad * dpad + num_rel * n_pad * dpad
    transcendentals = 0
    if fuse:
        flops += 2 * n_pad * (dpad * dpad + dpad * out_pad)
        transcendentals += n_pad
    bytes_accessed = (num_rel * n_pad * n_pad                        # int8 A
                      + (n_pad // tm) * num_rel * n_pad * dpad * 2   # Y per dst tile
                      + n_pad * dpad * 4 + n_pad * out_pad * 2)

    return pl.pallas_call(
        _make_sage_kernel(hidden_real, fuse),
        out_shape=jax.ShapeDtypeStruct((n_pad, out_pad), jnp.bfloat16),
        grid=(n_pad // tm, num_rel, n_pad // tk),
        in_specs=in_specs,
        out_specs=pl.BlockSpec((tm, out_pad), lambda i, r, k: (i, 0)),
        scratch_shapes=[pltpu.VMEM((tm, dpad), jnp.float32)],
        compiler_params=pltpu.CompilerParams(
            dimension_semantics=("parallel", "arbitrary", "arbitrary"),
            vmem_limit_bytes=vmem_limit),
        cost_estimate=pl.CostEstimate(flops=int(flops),
                                      transcendentals=int(transcendentals),
                                      bytes_accessed=int(bytes_accessed)),
    )(*args)


# ---------------------------------------------------------------------------
# Kernel 2: pooling head + classifier + softmax.
#   torch_scatter.scatter_mean over onset edges with out=x.clone():
#     pooled_i = (x_i + sum_{e: dst(e)=i} x_{src(e)}) / max(#edges_i, 1)
#   -> LayerNorm -> pool_mlp -> cad_clf (BatchNorm folded) -> exact softmax
# The onset adjacency / inverse-count slabs are reused from the layer kernels
# (no extra preprocessing pass); class dim is padded to 128 lanes (-1e30 bias).
# ---------------------------------------------------------------------------
def _make_head_kernel(h2_real):
    def kernel(hs_ref, a_ref, hd_ref, icnt_ref,
               gn_ref, bn_ref,
               wp1_ref, bp1_ref, gp_ref, bp_ref, wp2_ref, bp2_ref,
               wc1_ref, bc1_ref, wc2_ref, bc2_ref,
               o_ref, agg_ref):
        k = pl.program_id(1)

        @pl.when(k == 0)
        def _():
            agg_ref[...] = jnp.zeros_like(agg_ref)

        agg_ref[...] += jnp.dot(a_ref[0].astype(jnp.bfloat16), hs_ref[...],
                                preferred_element_type=jnp.float32)

        @pl.when(k == pl.num_programs(1) - 1)
        def _():
            pooled = (hd_ref[...].astype(jnp.float32) + agg_ref[...]) * icnt_ref[0]
            h = _masked_layernorm(pooled, gn_ref[...], bn_ref[...], h2_real)   # self.norm
            # pool_mlp: Linear -> ReLU -> LayerNorm -> Dropout(eval) -> Linear
            h = jnp.maximum(jnp.dot(h.astype(jnp.bfloat16), wp1_ref[...],
                                    preferred_element_type=jnp.float32) + bp1_ref[...], 0.0)
            h = _masked_layernorm(h, gp_ref[...], bp_ref[...], h2_real)
            h = jnp.dot(h.astype(jnp.bfloat16), wp2_ref[...],
                        preferred_element_type=jnp.float32) + bp2_ref[...]
            # cad_clf: Linear -> ReLU -> BatchNorm1d(eval, folded) -> Dropout -> Linear
            z = jnp.maximum(jnp.dot(h.astype(jnp.bfloat16), wc1_ref[...],
                                    preferred_element_type=jnp.float32) + bc1_ref[...], 0.0)
            logits = jnp.dot(z.astype(jnp.bfloat16), wc2_ref[...],
                             preferred_element_type=jnp.float32) + bc2_ref[...]
            m = jnp.max(logits, axis=-1, keepdims=True)
            e = jnp.exp(logits - m)
            # exact normalization: real-class probabilities sum to 1
            o_ref[...] = e * (1.0 / jnp.sum(e, axis=-1, keepdims=True))

    return kernel


def head(h_bf16, a_count, inv_deg, onset_ri, hp, geom, vmem_limit, h2_real):
    n_pad, tm, tk = geom
    h2pad = hp["wp1"].shape[0]
    h4pad = hp["wc1"].shape[-1]
    cpad = hp["wc2"].shape[-1]

    weights = [hp["gn"], hp["bn"],
               hp["wp1"], hp["bp1"], hp["gp"], hp["bp"], hp["wp2"], hp["bp2"],
               hp["wc1"], hp["bc1"], hp["wc2"], hp["bc2"]]

    in_specs = [
        pl.BlockSpec((tk, h2pad), lambda i, k: (k, 0)),             # h (src rows, bf16)
        pl.BlockSpec((1, tm, tk), lambda i, k: (onset_ri, i, k)),   # onset counts (int8)
        pl.BlockSpec((tm, h2pad), lambda i, k: (i, 0)),             # h (dst rows, bf16)
        pl.BlockSpec((1, tm, 1), lambda i, k: (onset_ri, i, 0)),    # 1/max(count,1)
    ] + [_full_spec(w) for w in weights]

    flops = 2 * n_pad * n_pad * h2pad + 2 * n_pad * (
        2 * h2pad * h2pad + h2pad * h4pad + h4pad * cpad)
    transcendentals = n_pad * (cpad + 3)
    bytes_accessed = (n_pad * n_pad + (n_pad // tm) * n_pad * h2pad * 2
                      + n_pad * h2pad * 2 + n_pad * cpad * 4)

    return pl.pallas_call(
        _make_head_kernel(h2_real),
        out_shape=jax.ShapeDtypeStruct((n_pad, cpad), jnp.float32),
        grid=(n_pad // tm, n_pad // tk),
        in_specs=in_specs,
        out_specs=pl.BlockSpec((tm, cpad), lambda i, k: (i, 0)),
        scratch_shapes=[pltpu.VMEM((tm, h2pad), jnp.float32)],
        compiler_params=pltpu.CompilerParams(
            dimension_semantics=("parallel", "arbitrary"),
            vmem_limit_bytes=vmem_limit),
        cost_estimate=pl.CostEstimate(flops=int(flops),
                                      transcendentals=int(transcendentals),
                                      bytes_accessed=int(bytes_accessed)),
    )(h_bf16, a_count, h_bf16, inv_deg, *weights)


# ---------------------------------------------------------------------------
# Parameter / adjacency glue (plain JAX)
# ---------------------------------------------------------------------------
def _linear_init(key, fan_in, fan_out):
    # PyTorch nn.Linear default: U(-1/sqrt(fan_in), 1/sqrt(fan_in)); W stored [in, out].
    kw, kb = jax.random.split(key)
    bound = 1.0 / float(fan_in) ** 0.5
    w = jax.random.uniform(kw, (fan_in, fan_out), jnp.float32, -bound, bound)
    b = jax.random.uniform(kb, (1, fan_out), jnp.float32, -bound, bound)
    return w, b


def _pad_mat(w, rp, cp, dtype=jnp.bfloat16):
    out = jnp.zeros((rp, cp), jnp.float32).at[: w.shape[0], : w.shape[1]].set(w)
    return out.astype(dtype)


def _pad_row(b, cp, fill=0.0):
    return jnp.full((1, cp), fill, jnp.float32).at[:, : b.shape[1]].set(b)


def init_params(key, num_rel, input_dim, hidden_dim, output_dim, num_layers):
    h2 = hidden_dim // 2
    h4 = hidden_dim // 4
    ipad = _round_up(input_dim, 128)
    hpad = _round_up(hidden_dim, 128)
    h2pad = _round_up(h2, 128)
    h4pad = _round_up(h4, 128)
    cpad = _round_up(output_dim, 128)

    keys = iter(jax.random.split(key, 4 * num_rel * num_layers + 32))
    params = {"dims": {"hidden": hidden_dim, "h2": h2}}

    layers = []
    d_in, d_in_pad = input_dim, ipad
    for _ in range(num_layers):
        wn = jnp.stack([_pad_mat(_linear_init(next(keys), d_in, hidden_dim)[0],
                                 d_in_pad, hpad) for _ in range(num_rel)])
        ws = [_linear_init(next(keys), d_in, hidden_dim) for _ in range(num_rel)]
        # Root-weight hoist: sum_r (x @ Ws[r] + b[r]) == x @ (sum_r Ws[r]) + sum_r b[r]
        ws_sum = sum(w for w, _ in ws)
        b_sum = sum(b for _, b in ws)
        layers.append({"wn": wn,
                       "ws_sum": _pad_mat(ws_sum, d_in_pad, hpad),
                       "b_sum": _pad_row(b_sum, hpad)})
        d_in, d_in_pad = hidden_dim, hpad
    params["gnn_layers"] = layers

    w1, b1 = _linear_init(next(keys), hidden_dim, hidden_dim)
    w2, b2 = _linear_init(next(keys), hidden_dim, h2)
    params["gnn_mlp"] = {
        "w1": _pad_mat(w1, hpad, hpad), "b1": _pad_row(b1, hpad),
        "g": _pad_row(jnp.ones((1, hidden_dim), jnp.float32), hpad),
        "be": _pad_row(jnp.zeros((1, hidden_dim), jnp.float32), hpad),
        "w2": _pad_mat(w2, hpad, h2pad), "b2": _pad_row(b2, h2pad),
    }

    hp = {}
    hp["gn"] = _pad_row(jnp.ones((1, h2), jnp.float32), h2pad)    # self.norm LayerNorm
    hp["bn"] = _pad_row(jnp.zeros((1, h2), jnp.float32), h2pad)
    wp1, bp1 = _linear_init(next(keys), h2, h2)
    wp2, bp2 = _linear_init(next(keys), h2, h2)
    hp["wp1"], hp["bp1"] = _pad_mat(wp1, h2pad, h2pad), _pad_row(bp1, h2pad)
    hp["gp"] = _pad_row(jnp.ones((1, h2), jnp.float32), h2pad)    # pool_mlp LayerNorm
    hp["bp"] = _pad_row(jnp.zeros((1, h2), jnp.float32), h2pad)
    hp["wp2"], hp["bp2"] = _pad_mat(wp2, h2pad, h2pad), _pad_row(bp2, h2pad)
    wc1, bc1 = _linear_init(next(keys), h2, h4)
    hp["wc1"], hp["bc1"] = _pad_mat(wc1, h2pad, h4pad), _pad_row(bc1, h4pad)
    wc2, bc2 = _linear_init(next(keys), h4, output_dim)
    # Fold eval-mode BatchNorm1d (fresh running stats mean=0, var=1, eps=1e-5)
    # into the following Linear: exact rewrite of (z*scale+shift) @ W + b.
    bn_eps = 1e-5
    bn_scale = 1.0 / jnp.sqrt(jnp.ones((h4,), jnp.float32) + bn_eps)
    bn_shift = jnp.zeros((h4,), jnp.float32)
    wc2f = bn_scale[:, None] * wc2
    bc2f = bn_shift[None, :] @ wc2 + bc2
    # Pad the class dim to a lane-dense 128 multiple; padded logits get a -1e30
    # bias so the in-kernel softmax over the padded slab is exact on real classes.
    hp["wc2"] = _pad_mat(wc2f, h4pad, cpad)
    hp["bc2"] = _pad_row(bc2f, cpad, fill=_NEG_INF)
    params["head"] = hp
    return params


def build_adjacency(edge_index_dict, rels, n_pad):
    """int8 edge-count adjacency [R, Np, Np] + exact f32 inverse degree [R, Np, 1]."""
    num_rel = len(rels)
    a = jnp.zeros((num_rel, n_pad, n_pad), jnp.int8)
    deg = jnp.zeros((num_rel, n_pad), jnp.float32)
    for ri, rel in enumerate(rels):
        src = edge_index_dict[rel][0]
        dst = edge_index_dict[rel][1]
        a = a.at[ri, dst, src].add(jnp.int8(1))
        deg = deg.at[ri, dst].add(1.0)
    inv_deg = (1.0 / jnp.maximum(deg, 1.0))[..., None]
    return a, inv_deg


def cadence_gnn_forward(x_note, edge_index_dict, params, output_dim):
    """Forward with neighbor_mask_node/edge = zeros, hybrid=False, no onset_div."""
    n, input_dim = x_note.shape
    dims = params["dims"]
    cap = _tpu_vmem_capacity()
    vmem_limit = _vmem_limit_bytes(cap)
    geom = _geometry(n, cap)
    n_pad = geom[0]

    rels = sorted(edge_index_dict.keys())
    onset_ri = rels.index(("note", "onset", "note"))
    a_count, inv_deg = build_adjacency(edge_index_dict, rels, n_pad)

    ipad = params["gnn_layers"][0]["wn"].shape[1]
    x = jnp.zeros((n_pad, ipad), jnp.float32).at[:n, :input_dim].set(x_note)
    h = x.astype(jnp.bfloat16)  # single cast; layer kernels emit bf16 directly

    layers = params["gnn_layers"]
    for li, lp in enumerate(layers):
        last = li == len(layers) - 1
        h = hetero_sage_layer(h, a_count, inv_deg, lp, geom, vmem_limit,
                              mlp=params["gnn_mlp"] if last else None,
                              hidden_real=dims["hidden"])
    probs_padded = head(h, a_count, inv_deg, onset_ri, params["head"], geom,
                        vmem_limit, h2_real=dims["h2"])
    return probs_padded[:n, :output_dim]  # [N, output_dim] softmax probabilities


if __name__ == "__main__":
    key = jax.random.PRNGKey(0)
    N, INPUT_DIM, HIDDEN_DIM, OUTPUT_DIM, NUM_LAYERS = 64, 16, 32, 4, 2
    metadata = (
        ["note"],
        [("note", "onset", "note"),
         ("note", "consecutive", "note"),
         ("note", "during", "note")],
    )

    k_x, k_e, k_p = jax.random.split(key, 3)
    x_note = jax.random.normal(k_x, (N, INPUT_DIM), dtype=jnp.float32)

    edge_index_dict = {}
    ekeys = jax.random.split(k_e, len(metadata[1]))
    for ek, rel in zip(ekeys, metadata[1]):
        edge_index_dict[rel] = jax.random.randint(ek, (2, 128), 0, N)

    params = init_params(k_p, len(metadata[1]), INPUT_DIM, HIDDEN_DIM,
                         OUTPUT_DIM, NUM_LAYERS)

    probs = cadence_gnn_forward(x_note, edge_index_dict, params, OUTPUT_DIM)
    probs = jax.block_until_ready(probs)
    assert probs.shape == (N, OUTPUT_DIM)
    assert bool(jnp.all(jnp.isfinite(probs)))
    assert bool(jnp.all(jnp.abs(jnp.sum(probs, axis=-1) - 1.0) < 1e-3))
    print("KERNEL_OK")
</pallas_src>

<mosaic_0001>
module attributes {stable_mosaic.version = 11 : i64} {
  func.func @kernel(%arg0: i32, %arg1: i32, %arg2: i32, %arg3: memref<1x64x128xbf16, #tpu.memory_space<vmem>>, %arg4: memref<1x64x64xi8, #tpu.memory_space<vmem>>, %arg5: memref<1x64x1xf32, #tpu.memory_space<vmem>>, %arg6: memref<64x128xf32, #tpu.memory_space<vmem>>, %arg7: memref<64x128xbf16, #tpu.memory_space<vmem>>, %arg8: memref<64x128xf32, #tpu.memory_space<vmem>>) attributes {dimension_semantics = [#tpu.dimension_semantics<parallel>, #tpu.dimension_semantics<arbitrary>, #tpu.dimension_semantics<arbitrary>], iteration_bounds = array<i64: 1, 3, 1>, scalar_prefetch = 0 : i64, scratch_operands = 1 : i64, tpu.core_type = #tpu.core_type<tc>, window_params = [{transform_indices = @transform_0, window_bounds = array<i64: 1, 64, 128>}, {transform_indices = @transform_1, window_bounds = array<i64: 1, 64, 64>}, {transform_indices = @transform_2, window_bounds = array<i64: 1, 64, 1>}, {transform_indices = @transform_3, window_bounds = array<i64: 64, 128>}, {transform_indices = @transform_4, window_bounds = array<i64: 64, 128>}]} {
    %c0_i32 = arith.constant 0 : i32
    %0 = arith.cmpi eq, %arg1, %c0_i32 : i32
    %c0_i32_0 = arith.constant 0 : i32
    %1 = arith.cmpi eq, %arg2, %c0_i32_0 : i32
    %2 = arith.andi %0, %1 : i1
    %3 = arith.extui %2 : i1 to i32
    %c0_i32_1 = arith.constant 0 : i32
    %4 = arith.cmpi ne, %3, %c0_i32_1 : i32
    scf.if %4 {
      %c0_16 = arith.constant 0 : index
      %c0_17 = arith.constant 0 : index
      %23 = vector.load %arg6[%c0_16, %c0_17] : memref<64x128xf32, #tpu.memory_space<vmem>>, vector<64x128xf32>
      %c0_18 = arith.constant 0 : index
      %c0_19 = arith.constant 0 : index
      %24 = vector.load %arg8[%c0_18, %c0_19] : memref<64x128xf32, #tpu.memory_space<vmem>>, vector<64x128xf32>
      tpu.vector_store %arg8[%c0_18, %c0_19], %23 {strides = array<i32>} : memref<64x128xf32, #tpu.memory_space<vmem>>, vector<64x128xf32>,
    } else {
    }
    %c0 = arith.constant 0 : index
    %c0_2 = arith.constant 0 : index
    %c0_3 = arith.constant 0 : index
    %5 = vector.load %arg4[%c0, %c0_2, %c0_3] : memref<1x64x64xi8, #tpu.memory_space<vmem>>, vector<1x64x64xi8>
    %6 = vector.shape_cast %5 : vector<1x64x64xi8> to vector<64x64xi8>
    %7 = arith.sitofp %6 : vector<64x64xi8> to vector<64x64xbf16>
    %c0_4 = arith.constant 0 : index
    %c0_5 = arith.constant 0 : index
    %c0_6 = arith.constant 0 : index
    %8 = vector.load %arg3[%c0_4, %c0_5, %c0_6] : memref<1x64x128xbf16, #tpu.memory_space<vmem>>, vector<1x64x128xbf16>
    %9 = vector.shape_cast %8 : vector<1x64x128xbf16> to vector<64x128xbf16>
    %cst = arith.constant dense<0.000000e+00> : vector<64x128xf32>
    %10 = tpu.matmul %7, %9, %cst {dimension_numbers = #tpu.dot_dimension_numbers<[1], [0], [0], [1], [0, 0, 1, 1], [], []>} : vector<64x64xbf16>, vector<64x128xbf16>, vector<64x128xf32> -> vector<64x128xf32>
    %c0_7 = arith.constant 0 : index
    %c0_8 = arith.constant 0 : index
    %11 = vector.load %arg8[%c0_7, %c0_8] : memref<64x128xf32, #tpu.memory_space<vmem>>, vector<64x128xf32>
    %c0_9 = arith.constant 0 : index
    %c0_10 = arith.constant 0 : index
    %c0_11 = arith.constant 0 : index
    %12 = vector.load %arg5[%c0_9, %c0_10, %c0_11] : memref<1x64x1xf32, #tpu.memory_space<vmem>>, vector<1x64x1xf32>
    %13 = vector.shape_cast %12 : vector<1x64x1xf32> to vector<64x1xf32>
    %14 = vector.broadcast %13 : vector<64x1xf32> to vector<64x128xf32>
    %15 = arith.mulf %14, %10 : vector<64x128xf32>
    %16 = arith.addf %11, %15 : vector<64x128xf32>
    %c0_12 = arith.constant 0 : index
    %c0_13 = arith.constant 0 : index
    %17 = vector.load %arg8[%c0_12, %c0_13] : memref<64x128xf32, #tpu.memory_space<vmem>>, vector<64x128xf32>
    tpu.vector_store %arg8[%c0_12, %c0_13], %16 {strides = array<i32>} : memref<64x128xf32, #tpu.memory_space<vmem>>, vector<64x128xf32>,
    %c2_i32 = arith.constant 2 : i32
    %18 = arith.cmpi eq, %arg1, %c2_i32 : i32
    %c0_i32_14 = arith.constant 0 : i32
    %19 = arith.cmpi eq, %arg2, %c0_i32_14 : i32
    %20 = arith.andi %18, %19 : i1
    %21 = arith.extui %20 : i1 to i32
    %c0_i32_15 = arith.constant 0 : i32
    %22 = arith.cmpi ne, %21, %c0_i32_15 : i32
    scf.if %22 {
      %c0_16 = arith.constant 0 : index
      %c0_17 = arith.constant 0 : index
      %23 = vector.load %arg8[%c0_16, %c0_17] : memref<64x128xf32, #tpu.memory_space<vmem>>, vector<64x128xf32>
      %cst_18 = arith.constant 0.000000e+00 : f32
      %24 = vector.broadcast %cst_18 : f32 to vector<64x128xf32>
      %25 = arith.maximumf %23, %24 : vector<64x128xf32>
      %26 = arith.truncf %25 : vector<64x128xf32> to vector<64x128xbf16>
      %c0_19 = arith.constant 0 : index
      %c0_20 = arith.constant 0 : index
      %27 = vector.load %arg7[%c0_19, %c0_20] : memref<64x128xbf16, #tpu.memory_space<vmem>>, vector<64x128xbf16>
      tpu.vector_store %arg7[%c0_19, %c0_20], %26 {strides = array<i32>} : memref<64x128xbf16, #tpu.memory_space<vmem>>, vector<64x128xbf16>,
    } else {
    }
    return
  }
  func.func @transform_0(%arg0: i32, %arg1: i32, %arg2: i32) -> (i32, i32, i32) {
    %c0_i32 = arith.constant 0 : i32
    %c0_i32_0 = arith.constant 0 : i32
    return %arg1, %arg2, %c0_i32 : i32, i32, i32
  }
  func.func @transform_1(%arg0: i32, %arg1: i32, %arg2: i32) -> (i32, i32, i32) {
    %c0_i32 = arith.constant 0 : i32
    return %arg1, %arg0, %arg2 : i32, i32, i32
  }
  func.func @transform_2(%arg0: i32, %arg1: i32, %arg2: i32) -> (i32, i32, i32) {
    %c0_i32 = arith.constant 0 : i32
    %c0_i32_0 = arith.constant 0 : i32
    return %arg1, %arg0, %c0_i32 : i32, i32, i32
  }
  func.func @transform_3(%arg0: i32, %arg1: i32, %arg2: i32) -> (i32, i32) {
    %c0_i32 = arith.constant 0 : i32
    %c0_i32_0 = arith.constant 0 : i32
    return %arg0, %c0_i32 : i32, i32
  }
  func.func @transform_4(%arg0: i32, %arg1: i32, %arg2: i32) -> (i32, i32) {
    %c0_i32 = arith.constant 0 : i32
    %c0_i32_0 = arith.constant 0 : i32
    return %arg0, %c0_i32 : i32, i32
  }
}

</mosaic_0001>

<llo_original>
// kernel: tpu_custom_call.1
$region0: #{tpu_custom_call.1}
  #allocation0 [shape = 'u32[]', space=smem, size = 0x4, offset = 0x4, fixed_abs, tag = 'smem constant byte address 0x4 - core index']
  #allocation1 [shape = 'u32[144,128]{1,0:T(1,128)}', space=vmem, size = 0x12000, scoped, tag = 'internal scratch']
  #allocation2 [shape = 'f32[64,128]{1,0:T(8,128)}', space=vmem, size = 0x8000, scoped, tag = 'scratch operand']
  %s0 = inlined_call_operand.vmem [shape: bf16[3,64,128], index: 0, kind: input, shape index: {}]
  %s1 = inlined_call_operand.hbm [shape: s8[3,64,64], index: 1, kind: input, shape index: {}]
  %s2 = inlined_call_operand.vmem [shape: f32[3,64,1], index: 2, kind: input, shape index: {}]
  %s3 = inlined_call_operand.vmem [shape: f32[64,128], index: 3, kind: input, shape index: {}]
  %s4 = inlined_call_operand.hbm [shape: bf16[64,128], index: 4, kind: output, shape index: {}]
  %s5 = sld [smem:[#allocation0]]
  $region61: #{tpu_custom_call.1} parent=0
    _
  %s7 = ssub.s32 1, %s5
  %s8 = scalar_select 0, %s7, %s5
  $region1: #{tpu_custom_call.1} parent=0
    #allocation3 [shape = 'u8[16384]{0}', space=vmem, size = 0x4000, scoped, tag = 'input window, operand 1']
    #allocation4 [shape = 's32[2]{0}', space=sflag, size = 0x8, scoped, tag = 'scoped memory for tpu_custom_call.1']
    #allocation5 [shape = 's32[2]{0}', space=sflag, size = 0x8, scoped, tag = 'scoped memory for tpu_custom_call.1']
    #allocation6 [shape = 'u8[16384]{0}', space=vmem, size = 0x4000, scoped, tag = 'output window, operand 0, single buffered']
    %9 = vsyncpa [#allocation4], 0
    %s10 = scalar_lea.sflag [#allocation4], 1
    %11 = vsyncpa %s10, 0
    %12 = vsyncpa [#allocation5], 0
    loop: start=0, step=1, limit=5
    $region2: #{tpu_custom_call.1} parent=1 // loop_pre_header
      _
    $region3: #{tpu_custom_call.1} parent=1 // loop_header
      %s14 = sphi 0, %s18
      %p15 = scmp.ge.s32.totalorder %s14, 5
      %s21 = sphi 0, %s40
      %s22 = sphi 0, %s36
      %s23 = sphi 0, %s32
      %s24 = sphi 0, %s21
      %s25 = sphi 0, %s22
      %s26 = sphi 0, %s23
      %s27 = sphi 0, %s24
      %s28 = sphi 0, %s25
      %s29 = sphi 0, %s26
      %s45 = sphi 0, %s47
      %s48 = sphi 0, %s45
      %s49 = sphi 0, %s48
      %s65 = sphi 0, %s49
      %s75 = sphi 0, %s77
      %s78 = sphi 0, %s75
      %s79 = sphi 0, %s78
      %s95 = sphi 0, %s79
      %s103 = sphi 0, %s105
      %s106 = sphi 0, %s103
      %s107 = sphi 0, %s106
      %s123 = sphi 0, %s107
      %s129 = sphi 0, %s131
      %s132 = sphi 0, %s129
      %s133 = sphi 0, %s132
      %s149 = sphi 0, %s133
      %s155 = sphi 0, %s157
      %s158 = sphi 0, %s155
      %s159 = sphi 0, %s158
      %s175 = sphi 0, %s159
    $region4: #{tpu_custom_call.1} parent=1 // loop_header_branch
      %17 = sbr.rel (%p15) target = $region8
    $region5: #{tpu_custom_call.1} parent=1 // loop_body
      %s19 = ssub.s32 %s14, 1
      %s20 = ssub.s32 %s14, 2
      %s30 = sadd.s32 1, %s23
      %p31 = scmp.ge.s32.totalorder %s30, 1
      %s32 = scalar_select %p31, 0, %s30
      %s33 = sadd.s32 1, %s22
      %s34 = scalar_select %p31, %s33, %s22
      %p35 = scmp.ge.s32.totalorder %s34, 3
      %s36 = scalar_select %p35, 0, %s34
      %s37 = sadd.s32 1, %s21
      %s38 = scalar_select %p35, %s37, %s21
      %p39 = scmp.ge.s32.totalorder %s38, 1
      %s40 = scalar_select %p39, 0, %s38
      %s41 = ssub.s32 %s22, %s36
      %s42 = ssub.s32 %s23, %s32
      %s43 = sor.u32 %s41, %s42
      %p44 = scmp.eq.s32.totalorder %s43, 0
      %s46 = sadd.s32 %s45, 1
      %s47 = scalar_select %p44, %s45, %s46
      %p50 = pneg %p44
      %p51 = scmp.eq.s32.totalorder %s14, 2
      %p52 = por %p50, %p51
      %p53 = scmp.ne.s32.totalorder %s45, %s48
      %p54 = scmp.eq.s32.totalorder %s14, 0
      %p55 = por %p53, %p54
      %p56 = scmp.ne.s32.totalorder %s45, %s48
      %p57 = scmp.eq.s32.totalorder %s19, 2
      %p58 = por %p56, %p57
      %p59 = scmp.ne.s32.totalorder %s48, %s49
      %p60 = scmp.eq.s32.totalorder %s19, 0
      %p61 = por %p59, %p60
      %p62 = scmp.ne.s32.totalorder %s48, %s49
      %p63 = scmp.eq.s32.totalorder %s20, 2
      %p64 = por %p62, %p63
      %p66 = scmp.ne.s32.totalorder %s49, %s65
      %p67 = scmp.eq.s32.totalorder %s20, 0
      %p68 = por %p66, %p67
      %s69 = ssub.s32 %s22, %s36
      %s70 = ssub.s32 %s21, %s40
      %s71 = sor.u32 %s69, %s70
      %s72 = ssub.s32 %s23, %s32
      %s73 = sor.u32 %s71, %s72
      %p74 = scmp.eq.s32.totalorder %s73, 0
      %s76 = sadd.s32 %s75, 1
      %s77 = scalar_select %p74, %s75, %s76
      %p80 = pneg %p74
      %p81 = scmp.eq.s32.totalorder %s14, 2
      %p82 = por %p80, %p81
      %p83 = scmp.ne.s32.totalorder %s75, %s78
      %p84 = scmp.eq.s32.totalorder %s14, 0
      %p85 = por %p83, %p84
      %p86 = scmp.ne.s32.totalorder %s75, %s78
      %p87 = scmp.eq.s32.totalorder %s19, 2
      %p88 = por %p86, %p87
      %p89 = scmp.ne.s32.totalorder %s78, %s79
      %p90 = scmp.eq.s32.totalorder %s19, 0
      %p91 = por %p89, %p90
      %p92 = scmp.ne.s32.totalorder %s78, %s79
      %p93 = scmp.eq.s32.totalorder %s20, 2
      %p94 = por %p92, %p93
      %p96 = scmp.ne.s32.totalorder %s79, %s95
      %p97 = scmp.eq.s32.totalorder %s20, 0
      %p98 = por %p96, %p97
      %s99 = ssub.s32 %s22, %s36
      %s100 = ssub.s32 %s21, %s40
      %s101 = sor.u32 %s99, %s100
      %p102 = scmp.eq.s32.totalorder %s101, 0
      %s104 = sadd.s32 %s103, 1
      %s105 = scalar_select %p102, %s103, %s104
      %p108 = pneg %p102
      %p109 = scmp.eq.s32.totalorder %s14, 2
      %p110 = por %p108, %p109
      %p111 = scmp.ne.s32.totalorder %s103, %s106
      %p112 = scmp.eq.s32.totalorder %s14, 0
      %p113 = por %p111, %p112
      %p114 = scmp.ne.s32.totalorder %s103, %s106
      %p115 = scmp.eq.s32.totalorder %s19, 2
      %p116 = por %p114, %p115
      %p117 = scmp.ne.s32.totalorder %s106, %s107
      %p118 = scmp.eq.s32.totalorder %s19, 0
      %p119 = por %p117, %p118
      %p120 = scmp.ne.s32.totalorder %s106, %s107
      %p121 = scmp.eq.s32.totalorder %s20, 2
      %p122 = por %p120, %p121
      %p124 = scmp.ne.s32.totalorder %s107, %s123
      %p125 = scmp.eq.s32.totalorder %s20, 0
      %p126 = por %p124, %p125
      %s127 = ssub.s32 %s21, %s40
      %p128 = scmp.eq.s32.totalorder %s127, 0
      %s130 = sadd.s32 %s129, 1
      %s131 = scalar_select %p128, %s129, %s130
      %p134 = pneg %p128
      %p135 = scmp.eq.s32.totalorder %s14, 2
      %p136 = por %p134, %p135
      %p137 = scmp.ne.s32.totalorder %s129, %s132
      %p138 = scmp.eq.s32.totalorder %s14, 0
      %p139 = por %p137, %p138
      %p140 = scmp.ne.s32.totalorder %s129, %s132
      %p141 = scmp.eq.s32.totalorder %s19, 2
      %p142 = por %p140, %p141
      %p143 = scmp.ne.s32.totalorder %s132, %s133
      %p144 = scmp.eq.s32.totalorder %s19, 0
      %p145 = por %p143, %p144
      %p146 = scmp.ne.s32.totalorder %s132, %s133
      %p147 = scmp.eq.s32.totalorder %s20, 2
      %p148 = por %p146, %p147
      %p150 = scmp.ne.s32.totalorder %s133, %s149
      %p151 = scmp.eq.s32.totalorder %s20, 0
      %p152 = por %p150, %p151
      %s153 = ssub.s32 %s21, %s40
      %p154 = scmp.eq.s32.totalorder %s153, 0
      %s156 = sadd.s32 %s155, 1
      %s157 = scalar_select %p154, %s155, %s156
      %p160 = pneg %p154
      %p161 = scmp.eq.s32.totalorder %s14, 2
      %p162 = por %p160, %p161
      %p163 = scmp.ne.s32.totalorder %s155, %s158
      %p164 = scmp.eq.s32.totalorder %s14, 0
      %p165 = por %p163, %p164
      %p166 = scmp.ne.s32.totalorder %s155, %s158
      %p167 = scmp.eq.s32.totalorder %s19, 2
      %p168 = por %p166, %p167
      %p169 = scmp.ne.s32.totalorder %s158, %s159
      %p170 = scmp.eq.s32.totalorder %s19, 0
      %p171 = por %p169, %p170
      %p172 = scmp.ne.s32.totalorder %s158, %s159
      %p173 = scmp.eq.s32.totalorder %s20, 2
      %p174 = por %p172, %p173
      %p176 = scmp.ne.s32.totalorder %s159, %s175
      %p177 = scmp.eq.s32.totalorder %s20, 0
      %p178 = por %p176, %p177
      %p179 = scmp.le.s32.totalorder 1, %s14
      %p180 = scmp.lt.s32.totalorder %s14, 4
      %p181 = pnand %p179, %p180
      %p182 = pneg %p181
      // Predicated region
      $region9: #{tpu_custom_call.1} parent=5 // pred_check
        _
      $region10: #{tpu_custom_call.1} parent=5 // pred_check_branch
        %184 = sbr.rel (%p181) target = $region12
      $region11: #{tpu_custom_call.1} parent=5 // pred_region
        %s185 = ssub.s32 %s14, 1
        // Predicated region
        $region13: #{tpu_custom_call.1} parent=11 // pred_check
          %p186 = pneg %p145
        $region14: #{tpu_custom_call.1} parent=11 // pred_check_branch
          %188 = sbr.rel (%p186) target = $region16
        $region15: #{tpu_custom_call.1} parent=11 // pred_region
          %s189 = smul.u32 8, %s24
          %p190 = scmp.lt.s32.totalorder %s189, 7
          %s191 = scalar_select %p190, %s189, 7
          %s192 = smul.addr %s191, 8
          %s193 = scalar_lea.vmem %s3, %s192
          %s194 = smul.u32 8, %s24
        $region16: #{tpu_custom_call.1} parent=11 // pred_fallthru
          _
      $region12: #{tpu_custom_call.1} parent=5 // pred_fallthru
        _
      %p195 = scmp.lt.s32.totalorder %s14, 3
      // Predicated region
      $region17: #{tpu_custom_call.1} parent=5 // pred_check
        %p196 = pneg %p195
      $region18: #{tpu_custom_call.1} parent=5 // pred_check_branch
        %198 = sbr.rel (%p196) target = $region20
      $region19: #{tpu_custom_call.1} parent=5 // pred_region
        // Predicated region
        $region21: #{tpu_custom_call.1} parent=19 // pred_check
          %p199 = pneg %p55
        $region22: #{tpu_custom_call.1} parent=19 // pred_check_branch
          %201 = sbr.rel (%p199) target = $region24
        $region23: #{tpu_custom_call.1} parent=19 // pred_region
          %s202 = smul.u32 8, %s23
          %p203 = scmp.lt.s32.totalorder %s22, 2
          %s204 = scalar_select %p203, %s22, 2
          %p205 = scmp.lt.s32.totalorder %s202, 7
          %s206 = scalar_select %p205, %s202, 7
          %s207 = smul.addr %s204, 8
          %s208 = sadd.s32 %s206, %s207
          %s209 = smul.addr %s208, 4
          %s210 = scalar_lea.vmem %s0, %s209
          %s211 = smul.u32 8, %s23
        $region24: #{tpu_custom_call.1} parent=19 // pred_fallthru
          _
        // Predicated region
        $region25: #{tpu_custom_call.1} parent=19 // pred_check
          %p212 = pneg %p85
        $region26: #{tpu_custom_call.1} parent=19 // pred_check_branch
          %214 = sbr.rel (%p212) target = $region28
        $region27: #{tpu_custom_call.1} parent=19 // pred_region
          %s215 = sand.u32 %s75, 1
          %s216 = scalar_lea.sflag [#allocation4], %s215
          %s217 = sand.u32 %s75, 1
          %s218 = smul.addr %s217, 16
          %s219 = scalar_lea.vmem [#allocation3], %s218
          %s220 = smul.u32 2, %s21
          %s222 = ssub.s32 256, 256
          %223 = vsyncadd %s216, %s222
          %s224 = sadd.s32 %s23, %s220
          %s225 = smul.addr %s22, 2
          %s226 = sadd.s32 %s224, %s225
          %s227 = smul.addr %s226, 128
          %s228 = scalar_lea.hbm %s1, %s227
          %s229 = sshll.u32 %s219, 4
          %s230 = int_to_ptr.vmem [resolvable:$true] %s229
          %235 = dma.hbm_to_vmem [thread:$0]  %s228, 256, %s230, %s216, 128, 128, 8
        $region28: #{tpu_custom_call.1} parent=19 // pred_fallthru
          _
        // Predicated region
        $region29: #{tpu_custom_call.1} parent=19 // pred_check
          %p236 = pneg %p113
        $region30: #{tpu_custom_call.1} parent=19 // pred_check_branch
          %238 = sbr.rel (%p236) target = $region32
        $region31: #{tpu_custom_call.1} parent=19 // pred_region
          %s239 = smul.u32 8, %s21
          %p240 = scmp.lt.s32.totalorder %s22, 2
          %s241 = scalar_select %p240, %s22, 2
          %p242 = scmp.lt.s32.totalorder %s239, 7
          %s243 = scalar_select %p242, %s239, 7
          %s244 = smul.addr %s241, 8
          %s245 = sadd.s32 %s243, %s244
          %s246 = smul.addr %s245, 8
          %s247 = scalar_lea.vmem %s2, %s246
          %s248 = smul.u32 8, %s21
        $region32: #{tpu_custom_call.1} parent=19 // pred_fallthru
          _
      $region20: #{tpu_custom_call.1} parent=5 // pred_fallthru
        _
      %p249 = scmp.le.s32.totalorder 1, %s14
      %p250 = scmp.lt.s32.totalorder %s14, 4
      %p251 = pnand %p249, %p250
      %p252 = pneg %p251
      // Predicated region
      $region33: #{tpu_custom_call.1} parent=5 // pred_check
        _
      $region34: #{tpu_custom_call.1} parent=5 // pred_check_branch
        %254 = sbr.rel (%p251) target = $region36
      $region35: #{tpu_custom_call.1} parent=5 // pred_region
        %s255 = ssub.s32 %s14, 1
        %s256 = sand.u32 %s78, 1
        %s257 = scalar_lea.sflag [#allocation4], %s256
        %s258 = sand.u32 %s78, 1
        %s259 = smul.addr %s258, 16
        %s260 = scalar_lea.vmem [#allocation3], %s259
        // Predicated region
        $region37: #{tpu_custom_call.1} parent=35 // pred_check
          %p261 = pneg %p91
        $region38: #{tpu_custom_call.1} parent=35 // pred_check_branch
          %263 = sbr.rel (%p261) target = $region40
        $region39: #{tpu_custom_call.1} parent=35 // pred_region
          %264 = dma.done %s257, 256
        $region40: #{tpu_custom_call.1} parent=35 // pred_fallthru
          _
        %s265 = smul.u32 8, %s26
        %p266 = scmp.lt.s32.totalorder %s25, 2
        %s267 = scalar_select %p266, %s25, 2
        %p268 = scmp.lt.s32.totalorder %s265, 7
        %s269 = scalar_select %p268, %s265, 7
        %s270 = smul.addr %s267, 8
        %s271 = sadd.s32 %s269, %s270
        %s272 = smul.addr %s271, 4
        %s273 = scalar_lea.vmem %s0, %s272
        %p274 = pneg %p61
        %p275 = pneg %p58
        %s276 = sand.u32 %s78, 1
        %s277 = scalar_lea.sflag [#allocation4], %s276
        %s278 = sand.u32 %s78, 1
        %s279 = smul.addr %s278, 16
        %s280 = scalar_lea.vmem [#allocation3], %s279
        %p281 = pneg %p91
        %p282 = pneg %p88
        %s283 = smul.u32 8, %s24
        %p284 = scmp.lt.s32.totalorder %s25, 2
        %s285 = scalar_select %p284, %s25, 2
        %p286 = scmp.lt.s32.totalorder %s283, 7
        %s287 = scalar_select %p286, %s283, 7
        %s288 = smul.addr %s285, 8
        %s289 = sadd.s32 %s287, %s288
        %s290 = smul.addr %s289, 8
        %s291 = scalar_lea.vmem %s2, %s290
        %p292 = pneg %p119
        %p293 = pneg %p116
        %s294 = smul.u32 8, %s24
        %p295 = scmp.lt.s32.totalorder %s294, 7
        %s296 = scalar_select %p295, %s294, 7
        %s297 = smul.addr %s296, 8
        %s298 = scalar_lea.vmem %s3, %s297
        %p299 = pneg %p145
        %p300 = pneg %p142
        %p301 = pneg %p171
        %p302 = pneg %p168
        %s303 = smul.u32 8, %s26
        %p304 = scmp.lt.s32.totalorder %s25, 2
        %s305 = scalar_select %p304, %s25, 2
        %p306 = scmp.lt.s32.totalorder %s303, 7
        %s307 = scalar_select %p306, %s303, 7
        %s308 = smul.addr %s305, 8
        %s309 = sadd.s32 %s307, %s308
        %s310 = smul.addr %s309, 4
        %s311 = scalar_lea.vmem %s0, %s310
        %s312 = smul.u32 8, %s26
        %s313 = smul.u32 2, %s24
        %s314 = smul.u32 8, %s24
        %p315 = scmp.lt.s32.totalorder %s25, 2
        %s316 = scalar_select %p315, %s25, 2
        %p317 = scmp.lt.s32.totalorder %s314, 7
        %s318 = scalar_select %p317, %s314, 7
        %s319 = smul.addr %s316, 8
        %s320 = sadd.s32 %s318, %s319
        %s321 = smul.addr %s320, 8
        %s322 = scalar_lea.vmem %s2, %s321
        %s323 = smul.u32 8, %s24
        %s324 = smul.u32 8, %s24
        %p325 = scmp.lt.s32.totalorder %s324, 7
        %s326 = scalar_select %p325, %s324, 7
        %s327 = smul.addr %s326, 8
        %s328 = scalar_lea.vmem %s3, %s327
        %s329 = smul.u32 8, %s24
        %s330 = smul.u32 8, %s24
        %p332 = scmp.eq.s32.totalorder %s25, 0
        %p333 = scmp.eq.s32.totalorder %s26, 0
        %p334 = pnand %p332, %p333
        %p335 = pneg %p334
        // Predicated region
        $region41: #{tpu_custom_call.1} parent=35 // pred_check
          _
        $region42: #{tpu_custom_call.1} parent=35 // pred_check_branch
          %337 = sbr.rel (%p334) target = $region44
        $region43: #{tpu_custom_call.1} parent=35 // pred_region
          %v338 = vld [vmem:[%s328] sm:$0xff]
          %v339 = vld [vmem:[%s328 + $0x8] sm:$0xff]
          %v340 = vld [vmem:[%s328 + $0x10] sm:$0xff]
          %v341 = vld [vmem:[%s328 + $0x18] sm:$0xff]
          %v342 = vld [vmem:[%s328 + $0x20] sm:$0xff]
          %v343 = vld [vmem:[%s328 + $0x28] sm:$0xff]
          %v344 = vld [vmem:[%s328 + $0x30] sm:$0xff]
          %v345 = vld [vmem:[%s328 + $0x38] sm:$0xff]
          %346 = vst [vmem:[#allocation2] sm:$0xff] %v338
          %347 = vst [vmem:[#allocation2 + $0x8] sm:$0xff] %v339
          %348 = vst [vmem:[#allocation2 + $0x10] sm:$0xff] %v340
          %349 = vst [vmem:[#allocation2 + $0x18] sm:$0xff] %v341
          %350 = vst [vmem:[#allocation2 + $0x20] sm:$0xff] %v342
          %351 = vst [vmem:[#allocation2 + $0x28] sm:$0xff] %v343
          %352 = vst [vmem:[#allocation2 + $0x30] sm:$0xff] %v344
          %353 = vst [vmem:[#allocation2 + $0x38] sm:$0xff] %v345
        $region44: #{tpu_custom_call.1} parent=35 // pred_fallthru
          _
        %v354 = vld [vmem:[%s260] sm:$0xff]
        %v355 = vld [vmem:[%s260 + $0x8] sm:$0xff]
        %v356 = vunpack.c.l.s8.bf16 %v354
        %v357 = vunpack.c.h.s8.bf16 %v354
        %v358 = vunpack.c.l.s8.bf16 %v355
        %v359 = vunpack.c.h.s8.bf16 %v355
        %v360 = vld [vmem:[%s311] sm:$0xf]
        %v361 = vld [vmem:[%s311 + $0x4] sm:$0xf]
        %v362 = vld [vmem:[%s311 + $0x8] sm:$0xf]
        %v363 = vld [vmem:[%s311 + $0xc] sm:$0xf]
        %v364 = vld [vmem:[%s311 + $0x10] sm:$0xf]
        %v365 = vld [vmem:[%s311 + $0x14] sm:$0xf]
        %v366 = vld [vmem:[%s311 + $0x18] sm:$0xf]
        %v367 = vld [vmem:[%s311 + $0x1c] sm:$0xf]
        %v376 = vunpack.c.l.b16 %v360
        %v377 = vunpack.c.l.b16 %v361
        %v378 = vunpack.c.l.b16 %v362
        %v379 = vunpack.c.l.b16 %v363
        %v380 = vunpack.c.l.b16 %v364
        %v381 = vunpack.c.l.b16 %v365
        %v382 = vunpack.c.l.b16 %v366
        %v383 = vunpack.c.l.b16 %v367
        %v384 = vpack.c.b16 %v377, %v376
        %v385 = vpack.c.b16 %v379, %v378
        %v386 = vpack.c.b16 %v381, %v380
        %v387 = vpack.c.b16 %v383, %v382
        %vm392 = vcmask 523264
        %v394 = vsel %vm392, %v356, 0
        %v397 = vsel %vm392, %v357, 0
        %v400 = vsel %vm392, %v358, 0
        %v403 = vsel %vm392, %v359, 0
        %405 = vmatprep.subr.bf16.mxu0 0
        %406 = vmatpush1.bf16.msra.mxu0 0
        %407 = vmatprep.subr.bf16.mxu0 0
        %408 = vmatpush1.bf16.msra.mxu0 0
        %409 = vmatprep.subr.bf16.mxu0 0
        %410 = vmatpush1.bf16.msra.mxu0 0
        %411 = vmatprep.subr.bf16.mxu0 0
        %412 = vmatpush1.bf16.msra.mxu0 0
        %413 = vmatprep.subr.bf16.mxu0 0
        %414 = vmatpush1.bf16.msra.mxu0 %v387
        %415 = vmatprep.subr.bf16.mxu0 0
        %416 = vmatpush1.bf16.msra.mxu0 %v386
        %417 = vmatprep.subr.bf16.mxu0 0
        %418 = vmatpush1.bf16.msra.mxu0 %v385
        %419 = vmatprep.subr.bf16.mxu0 0
        %420 = vmatpush1.bf16.msra.mxu0 %v384
        %421 = vmatprep.subr.bf16.mxu0 0
        %422 = vmatpush2.bf16.msra.mxu0 0
        %423 = vmatprep.subr.bf16.mxu0 0
        %424 = vmatpush2.bf16.msra.mxu0 0
        %425 = vmatprep.subr.bf16.mxu0 0
        %426 = vmatpush2.bf16.msra.mxu0 0
        %427 = vmatprep.subr.bf16.mxu0 0
        %428 = vmatpush2.bf16.msra.mxu0 0
        %429 = vmatprep.subr.bf16.mxu0 0
        %430 = vmatpush2.bf16.msra.mxu0 0
        %431 = vmatprep.subr.bf16.mxu0 0
        %432 = vmatpush2.bf16.msra.mxu0 0
        %433 = vmatprep.subr.bf16.mxu0 0
        %434 = vmatpush2.bf16.msra.mxu0 0
        %435 = vmatprep.subr.bf16.mxu0 0
        %436 = vmatpush2.bf16.msra.mxu0 0
        %437 = vmatprep.mubr.bf16.mxu0 0
        %438 = vmatmul.mubr.bf16.gmra.mxu0 %v394
        %v439 = vpop.f32.mrf.mxu0
        %v440 = vadd.f32 0.0, %v439
        %v441 = vpop.f32.mrf.mxu0
        %v442 = vpop.f32.mrf.mxu0
        %v443 = vadd.f32 0.0, %v442
        %v444 = vpop.f32.mrf.mxu0
        %445 = vmatprep.mubr.bf16.mxu0 0
        %446 = vmatmul.mubr.bf16.gmra.mxu0 %v397
        %v447 = vpop.f32.mrf.mxu0
        %v448 = vadd.f32 0.0, %v447
        %v449 = vpop.f32.mrf.mxu0
        %v450 = vpop.f32.mrf.mxu0
        %v451 = vadd.f32 0.0, %v450
        %v452 = vpop.f32.mrf.mxu0
        %453 = vmatprep.mubr.bf16.mxu0 0
        %454 = vmatmul.mubr.bf16.gmra.mxu0 %v400
        %v455 = vpop.f32.mrf.mxu0
        %v456 = vadd.f32 0.0, %v455
        %v457 = vpop.f32.mrf.mxu0
        %v458 = vpop.f32.mrf.mxu0
        %v459 = vadd.f32 0.0, %v458
        %v460 = vpop.f32.mrf.mxu0
        %461 = vmatprep.mubr.bf16.mxu0 0
        %462 = vmatmul.mubr.bf16.gmra.mxu0 %v403
        %v463 = vpop.f32.mrf.mxu0
        %v464 = vadd.f32 0.0, %v463
        %v465 = vpop.f32.mrf.mxu0
        %v466 = vpop.f32.mrf.mxu0
        %v467 = vadd.f32 0.0, %v466
        %v468 = vpop.f32.mrf.mxu0
        %469 = vdwg.mxu0
        %v470 = vld [vmem:[#allocation2] sm:$0xff]
        %v471 = vld [vmem:[#allocation2 + $0x8] sm:$0xff]
        %v472 = vld [vmem:[#allocation2 + $0x10] sm:$0xff]
        %v473 = vld [vmem:[#allocation2 + $0x18] sm:$0xff]
        %v474 = vld [vmem:[#allocation2 + $0x20] sm:$0xff]
        %v475 = vld [vmem:[#allocation2 + $0x28] sm:$0xff]
        %v476 = vld [vmem:[#allocation2 + $0x30] sm:$0xff]
        %v477 = vld [vmem:[#allocation2 + $0x38] sm:$0xff]
        %v478 = vld [vmem:[%s322] sm:$0xff]
        %v479 = vld [vmem:[%s322 + $0x8] sm:$0xff]
        %v480 = vld [vmem:[%s322 + $0x10] sm:$0xff]
        %v481 = vld [vmem:[%s322 + $0x18] sm:$0xff]
        %v482 = vld [vmem:[%s322 + $0x20] sm:$0xff]
        %v483 = vld [vmem:[%s322 + $0x28] sm:$0xff]
        %v484 = vld [vmem:[%s322 + $0x30] sm:$0xff]
        %v485 = vld [vmem:[%s322 + $0x38] sm:$0xff]
        %487 = vset.pattern.permute.xlu0 0
        %488 = vperm.xlu0 %487, %v478
        %v489 = vpop.permute.xlu0 %488
        %492 = vset.pattern.permute.xlu0 0
        %493 = vperm.xlu0 %492, %v479
        %v494 = vpop.permute.xlu0 %493
        %497 = vset.pattern.permute.xlu0 0
        %498 = vperm.xlu0 %497, %v480
        %v499 = vpop.permute.xlu0 %498
        %502 = vset.pattern.permute.xlu0 0
        %503 = vperm.xlu0 %502, %v481
        %v504 = vpop.permute.xlu0 %503
        %507 = vset.pattern.permute.xlu0 0
        %508 = vperm.xlu0 %507, %v482
        %v509 = vpop.permute.xlu0 %508
        %512 = vset.pattern.permute.xlu0 0
        %513 = vperm.xlu0 %512, %v483
        %v514 = vpop.permute.xlu0 %513
        %517 = vset.pattern.permute.xlu0 0
        %518 = vperm.xlu0 %517, %v484
        %v519 = vpop.permute.xlu0 %518
        %522 = vset.pattern.permute.xlu0 0
        %523 = vperm.xlu0 %522, %v485
        %v524 = vpop.permute.xlu0 %523
        %v526 = vmul.f32 %v489, %v440
        %v527 = vmul.f32 %v494, %v443
        %v528 = vmul.f32 %v499, %v448
        %v529 = vmul.f32 %v504, %v451
        %v530 = vmul.f32 %v509, %v456
        %v531 = vmul.f32 %v514, %v459
        %v532 = vmul.f32 %v519, %v464
        %v533 = vmul.f32 %v524, %v467
        %v534 = vadd.f32 %v470, %v526
        %v535 = vadd.f32 %v471, %v527
        %v536 = vadd.f32 %v472, %v528
        %v537 = vadd.f32 %v473, %v529
        %v538 = vadd.f32 %v474, %v530
        %v539 = vadd.f32 %v475, %v531
        %v540 = vadd.f32 %v476, %v532
        %v541 = vadd.f32 %v477, %v533
        %542 = vst [vmem:[#allocation2] sm:$0xff] %v534
        %543 = vst [vmem:[#allocation2 + $0x8] sm:$0xff] %v535
        %544 = vst [vmem:[#allocation2 + $0x10] sm:$0xff] %v536
        %545 = vst [vmem:[#allocation2 + $0x18] sm:$0xff] %v537
        %546 = vst [vmem:[#allocation2 + $0x20] sm:$0xff] %v538
        %547 = vst [vmem:[#allocation2 + $0x28] sm:$0xff] %v539
        %548 = vst [vmem:[#allocation2 + $0x30] sm:$0xff] %v540
        %549 = vst [vmem:[#allocation2 + $0x38] sm:$0xff] %v541
        %p550 = scmp.eq.s32.totalorder %s25, 2
        %p551 = pnand %p550, %p333
        %p552 = pneg %p551
        // Predicated region
        $region45: #{tpu_custom_call.1} parent=35 // pred_check
          _
        $region46: #{tpu_custom_call.1} parent=35 // pred_check_branch
          %554 = sbr.rel (%p551) target = $region48
        $region47: #{tpu_custom_call.1} parent=35 // pred_region
          %v555 = vld [vmem:[#allocation2] sm:$0xff]
          %v556 = vld [vmem:[#allocation2 + $0x8] sm:$0xff]
          %v557 = vld [vmem:[#allocation2 + $0x10] sm:$0xff]
          %v558 = vld [vmem:[#allocation2 + $0x18] sm:$0xff]
          %v559 = vld [vmem:[#allocation2 + $0x20] sm:$0xff]
          %v560 = vld [vmem:[#allocation2 + $0x28] sm:$0xff]
          %v561 = vld [vmem:[#allocation2 + $0x30] sm:$0xff]
          %v562 = vld [vmem:[#allocation2 + $0x38] sm:$0xff]
          %v563 = vmax.f32 %v555, 0.0
          %v564 = vmax.f32 %v556, 0.0
          %v565 = vmax.f32 %v557, 0.0
          %v566 = vmax.f32 %v558, 0.0
          %v567 = vmax.f32 %v559, 0.0
          %v568 = vmax.f32 %v560, 0.0
          %v569 = vmax.f32 %v561, 0.0
          %v570 = vmax.f32 %v562, 0.0
          %v571 = vpack.c.bf16 %v564, %v563
          %v572 = vpack.c.bf16 %v566, %v565
          %v573 = vpack.c.bf16 %v568, %v567
          %v574 = vpack.c.bf16 %v570, %v569
          %v579 = vunpack.c.l.b16 %v571
          %v580 = vunpack.c.h.b16 %v571
          %v581 = vunpack.c.l.b16 %v572
          %v582 = vunpack.c.h.b16 %v572
          %v583 = vunpack.c.l.b16 %v573
          %v584 = vunpack.c.h.b16 %v573
          %v585 = vunpack.c.l.b16 %v574
          %v586 = vunpack.c.h.b16 %v574
          %v587 = vpack.c.b16 %v579, %v579
          %v588 = vpack.c.b16 %v580, %v580
          %v589 = vpack.c.b16 %v581, %v581
          %v590 = vpack.c.b16 %v582, %v582
          %v591 = vpack.c.b16 %v583, %v583
          %v592 = vpack.c.b16 %v584, %v584
          %v593 = vpack.c.b16 %v585, %v585
          %v594 = vpack.c.b16 %v586, %v586
          %603 = vst [vmem:[#allocation6] sm:$0xf] %v587
          %604 = vst [vmem:[#allocation6 + $0x4] sm:$0xf] %v588
          %605 = vst [vmem:[#allocation6 + $0x8] sm:$0xf] %v589
          %606 = vst [vmem:[#allocation6 + $0xc] sm:$0xf] %v590
          %607 = vst [vmem:[#allocation6 + $0x10] sm:$0xf] %v591
          %608 = vst [vmem:[#allocation6 + $0x14] sm:$0xf] %v592
          %609 = vst [vmem:[#allocation6 + $0x18] sm:$0xf] %v593
          %610 = vst [vmem:[#allocation6 + $0x1c] sm:$0xf] %v594
        $region48: #{tpu_custom_call.1} parent=35 // pred_fallthru
          _
        // Predicated region
        $region49: #{tpu_custom_call.1} parent=35 // pred_check
          %p611 = pneg %p168
        $region50: #{tpu_custom_call.1} parent=35 // pred_check_branch
          %613 = sbr.rel (%p611) target = $region52
        $region51: #{tpu_custom_call.1} parent=35 // pred_region
          %s614 = smul.u32 8, %s24
          %s616 = ssub.s32 512, 512
          %617 = vsyncadd [#allocation5], %s616
          %s618 = smul.addr %s614, 64
          %s619 = scalar_lea.hbm %s4, %s618
          %s620 = sshll.u32 [#allocation6], 4
          %s621 = int_to_ptr.vmem [resolvable:$true] %s620
          %626 = dma.vmem_to_hbm [thread:$0]  %s621, 512, %s619, [#allocation5], 64, 64, 4
        $region52: #{tpu_custom_call.1} parent=35 // pred_fallthru
          _
        // Predicated region
        $region53: #{tpu_custom_call.1} parent=35 // pred_check
          %p627 = pneg %p168
        $region54: #{tpu_custom_call.1} parent=35 // pred_check_branch
          %629 = sbr.rel (%p627) target = $region56
        $region55: #{tpu_custom_call.1} parent=35 // pred_region
          %630 = dma.done [#allocation5], 512
        $region56: #{tpu_custom_call.1} parent=35 // pred_fallthru
          _
      $region36: #{tpu_custom_call.1} parent=5 // pred_fallthru
        _
      %p631 = scmp.le.s32.totalorder 2, %s14
      // Predicated region
      $region57: #{tpu_custom_call.1} parent=5 // pred_check
        %p632 = pneg %p631
      $region58: #{tpu_custom_call.1} parent=5 // pred_check_branch
        %634 = sbr.rel (%p632) target = $region60
      $region59: #{tpu_custom_call.1} parent=5 // pred_region
        %s635 = ssub.s32 %s14, 2
      $region60: #{tpu_custom_call.1} parent=5 // pred_fallthru
        _
    $region6: #{tpu_custom_call.1} parent=1 // loop_footer
      %s18 = sadd.s32 1, %s14
    $region7: #{tpu_custom_call.1} parent=1 // loop_footer_branch
      %13 = sbr.rel target = $region3
    $region8: #{tpu_custom_call.1} parent=1 // loop_exit
      _
    %636 = vsyncpa [#allocation4], 1
    %s637 = scalar_lea.sflag [#allocation4], 1
    %638 = vsyncpa %s637, 1
    %639 = vsyncpa [#allocation5], 1
    %s640 = scalar_lea.sflag [#allocation5], 1
    %641 = vsyncpa %s640, 1

</llo_original>
